<compile_context>
chip_gen: v7x
topology: tpu7x:2x2x1
jax: 0.10.0
libtpu: 0.0.40
codegen_flags: <defaults>
</compile_context>

<pallas_src>
import math

import jax
import jax.numpy as jnp
from jax import lax
from jax.experimental import pallas as pl
from jax.experimental.pallas import tpu as pltpu

_LANES = 128
_DEFAULT_TM = 1024  # rows per tile; (1024,128) f32 tile = 512 KiB, ~2-3 MiB live with double buffering


def _hash_u32(x):
    """lowbias32-style avalanche hash on uint32 (pure elementwise VPU ops)."""
    x = (x ^ lax.shift_right_logical(x, jnp.uint32(17))) * jnp.uint32(0xED5AD4BB)
    x = (x ^ lax.shift_right_logical(x, jnp.uint32(11))) * jnp.uint32(0xAC4C1B51)
    x = (x ^ lax.shift_right_logical(x, jnp.uint32(15))) * jnp.uint32(0x31848BAB)
    x = x ^ lax.shift_right_logical(x, jnp.uint32(14))
    return x


def _uniform_from_bits(bits, offset):
    """24-bit-mantissa uniform. offset=1.0 -> (0,1] (safe for log); offset=0.0 -> [0,1)."""
    inv_2_24 = jnp.float32(1.0 / 16777216.0)
    return (lax.shift_right_logical(bits, jnp.uint32(8)).astype(jnp.float32)
            + jnp.float32(offset)) * inv_2_24


def _hidden_aug_kernel(seed_ref, ratio_ref, x_ref, o_ref):
    tm, lanes = x_ref.shape
    half = tm // 2                      # tm is always a multiple of 16 (see wrapper)
    half_elems = half * lanes

    # Globally-unique per-element counter across tiles -> decorrelated noise per tile.
    row = lax.broadcasted_iota(jnp.uint32, (half, lanes), 0)
    col = lax.broadcasted_iota(jnp.uint32, (half, lanes), 1)
    pid = pl.program_id(0).astype(jnp.uint32)
    ctr = pid * jnp.uint32(half_elems) + row * jnp.uint32(lanes) + col

    key = _hash_u32(seed_ref[0].astype(jnp.uint32))
    b1 = _hash_u32(ctr ^ key)
    b2 = _hash_u32(ctr ^ key ^ jnp.uint32(0x9E3779B9))

    u1 = _uniform_from_bits(b1, 1.0)    # (0, 1]
    u2 = _uniform_from_bits(b2, 0.0)    # [0, 1)

    # Box-Muller, using BOTH outputs: 2 standard normals per (u1, u2) pair.
    r = jnp.sqrt(jnp.float32(-2.0) * jnp.log(u1))
    theta = jnp.float32(2.0 * math.pi) * u2
    z1 = r * jnp.cos(theta)
    z2 = r * jnp.sin(theta)

    ratio = ratio_ref[0]                # f32 scalar from SMEM

    def apply(x_tile, z):
        xf = x_tile if x_tile.dtype == jnp.float32 else x_tile.astype(jnp.float32)
        out = xf * (jnp.float32(1.0) + z * ratio)
        return out if out.dtype == o_ref.dtype else out.astype(o_ref.dtype)

    # Static half-tile slices (sublane-aligned: half is a multiple of 8).
    o_ref[:half, :] = apply(x_ref[:half, :], z1)
    o_ref[half:, :] = apply(x_ref[half:, :], z2)


def hidden_augmentation(x, noise_ratio, seed, training=True):
    """JAX/Pallas equivalent of HiddenAugmentation.forward."""
    if not training:
        return x
    if isinstance(noise_ratio, (int, float)) and float(noise_ratio) == 0.0:
        return x

    orig_shape = x.shape
    orig_dtype = x.dtype
    total = x.size

    # Flatten to a lane-dense (rows, 128) slab; pad rows to a multiple of 16 so
    # every tile splits cleanly into two sublane-aligned halves.
    rows = -(-total // _LANES)
    rows_padded = -(-rows // 16) * 16
    padded_total = rows_padded * _LANES

    flat = x.reshape(-1)
    if padded_total != total:
        flat = jnp.pad(flat, (0, padded_total - total))
    x2d = flat.reshape(rows_padded, _LANES)

    tm = min(_DEFAULT_TM, rows_padded)
    grid = (pl.cdiv(rows_padded, tm),)

    seed_arr = jnp.asarray([seed], dtype=jnp.int32)
    ratio_arr = jnp.asarray([noise_ratio], dtype=jnp.float32)

    out2d = pl.pallas_call(
        _hidden_aug_kernel,
        out_shape=jax.ShapeDtypeStruct((rows_padded, _LANES), orig_dtype),
        grid=grid,
        in_specs=[
            pl.BlockSpec(memory_space=pltpu.MemorySpace.SMEM),   # seed
            pl.BlockSpec(memory_space=pltpu.MemorySpace.SMEM),   # noise_ratio
            pl.BlockSpec((tm, _LANES), lambda i: (i, 0)),        # x tiles
        ],
        out_specs=pl.BlockSpec((tm, _LANES), lambda i: (i, 0)),
        compiler_params=pltpu.CompilerParams(
            dimension_semantics=("parallel",),
        ),
    )(seed_arr, ratio_arr, x2d)

    out_flat = out2d.reshape(-1)
    if padded_total != total:
        out_flat = out_flat[:total]
    return out_flat.reshape(orig_shape)


if __name__ == "__main__":
    key = jax.random.PRNGKey(0)
    # NCHW input consistent with typical conv feature maps: batch=2, C=4, H=W=16
    x = jax.random.normal(key, (2, 4, 16, 16), dtype=jnp.float32)

    noise_ratio = 0.1

    # training=True path (the hot path: fused elementwise noise-multiply)
    y_train = hidden_augmentation(x, noise_ratio, seed=0, training=True)
    y_train = jax.block_until_ready(y_train)

    # eval path is identity (matches PyTorch module when self.training is False)
    y_eval = hidden_augmentation(x, noise_ratio, seed=0, training=False)
    y_eval = jax.block_until_ready(y_eval)

    # Sanity checks: shapes/dtypes preserved, eval is exact identity,
    # training noise is a plausible multiplicative perturbation.
    assert y_train.shape == x.shape and y_train.dtype == x.dtype
    assert bool(jnp.all(y_eval == x))
    assert bool(jnp.isfinite(y_train).all())

    implied = (y_train / jnp.where(jnp.abs(x) > 1e-6, x, 1.0) - 1.0) / noise_ratio
    # implied z should look roughly standard normal (loose bounds, deterministic seed)
    assert float(jnp.abs(implied.mean())) < 0.3
    assert 0.5 < float(implied.std()) < 1.5
    assert float(jnp.abs(y_train / jnp.where(jnp.abs(x) > 1e-6, x, 1.0) - 1.0).mean()) < 1.0

    print("KERNEL_OK")
</pallas_src>

<mosaic_0001>
module attributes {stable_mosaic.version = 11 : i64} {
  func.func @_hidden_aug_kernel(%arg0: i32, %arg1: memref<1xi32, #tpu.memory_space<smem>>, %arg2: memref<1xf32, #tpu.memory_space<smem>>, %arg3: memref<16x128xf32, #tpu.memory_space<vmem>>, %arg4: memref<16x128xf32, #tpu.memory_space<vmem>>) attributes {dimension_semantics = [#tpu.dimension_semantics<parallel>], iteration_bounds = array<i64: 1>, scalar_prefetch = 0 : i64, scratch_operands = 0 : i64, tpu.core_type = #tpu.core_type<tc>, window_params = [{transform_indices = @transform_0, window_bounds = array<i64: 1>}, {transform_indices = @transform_1, window_bounds = array<i64: 1>}, {transform_indices = @transform_2, window_bounds = array<i64: 16, 128>}, {transform_indices = @transform_3, window_bounds = array<i64: 16, 128>}]} {
    %0 = tpu.iota {dimensions = array<i32: 0>} : vector<8x128xi32>
    %1 = tpu.iota {dimensions = array<i32: 1>} : vector<8x128xi32>
    %c1024_i32 = arith.constant 1024 : i32
    %2 = arith.muli %arg0, %c1024_i32 : i32
    %c128_i32 = arith.constant 128 : i32
    %3 = vector.broadcast %c128_i32 : i32 to vector<8x128xi32>
    %4 = arith.muli %0, %3 : vector<8x128xi32>
    %5 = vector.broadcast %2 : i32 to vector<8x128xi32>
    %6 = arith.addi %5, %4 : vector<8x128xi32>
    %7 = arith.addi %6, %1 : vector<8x128xi32>
    %c0 = arith.constant 0 : index
    %8 = memref.load %arg1[%c0] : memref<1xi32, #tpu.memory_space<smem>>
    %c17_i32 = arith.constant 17 : i32
    %9 = arith.shrui %8, %c17_i32 : i32
    %10 = arith.xori %8, %9 : i32
    %c-312814405_i32 = arith.constant -312814405 : i32
    %11 = arith.muli %10, %c-312814405_i32 : i32
    %c11_i32 = arith.constant 11 : i32
    %12 = arith.shrui %11, %c11_i32 : i32
    %13 = arith.xori %11, %12 : i32
    %c-1404298415_i32 = arith.constant -1404298415 : i32
    %14 = arith.muli %13, %c-1404298415_i32 : i32
    %c15_i32 = arith.constant 15 : i32
    %15 = arith.shrui %14, %c15_i32 : i32
    %16 = arith.xori %14, %15 : i32
    %c830770091_i32 = arith.constant 830770091 : i32
    %17 = arith.muli %16, %c830770091_i32 : i32
    %c14_i32 = arith.constant 14 : i32
    %18 = arith.shrui %17, %c14_i32 : i32
    %19 = arith.xori %17, %18 : i32
    %20 = vector.broadcast %19 : i32 to vector<8x128xi32>
    %21 = arith.xori %7, %20 : vector<8x128xi32>
    %c17_i32_0 = arith.constant 17 : i32
    %22 = vector.broadcast %c17_i32_0 : i32 to vector<8x128xi32>
    %23 = arith.shrui %21, %22 : vector<8x128xi32>
    %24 = arith.xori %21, %23 : vector<8x128xi32>
    %c-312814405_i32_1 = arith.constant -312814405 : i32
    %25 = vector.broadcast %c-312814405_i32_1 : i32 to vector<8x128xi32>
    %26 = arith.muli %24, %25 : vector<8x128xi32>
    %c11_i32_2 = arith.constant 11 : i32
    %27 = vector.broadcast %c11_i32_2 : i32 to vector<8x128xi32>
    %28 = arith.shrui %26, %27 : vector<8x128xi32>
    %29 = arith.xori %26, %28 : vector<8x128xi32>
    %c-1404298415_i32_3 = arith.constant -1404298415 : i32
    %30 = vector.broadcast %c-1404298415_i32_3 : i32 to vector<8x128xi32>
    %31 = arith.muli %29, %30 : vector<8x128xi32>
    %c15_i32_4 = arith.constant 15 : i32
    %32 = vector.broadcast %c15_i32_4 : i32 to vector<8x128xi32>
    %33 = arith.shrui %31, %32 : vector<8x128xi32>
    %34 = arith.xori %31, %33 : vector<8x128xi32>
    %c830770091_i32_5 = arith.constant 830770091 : i32
    %35 = vector.broadcast %c830770091_i32_5 : i32 to vector<8x128xi32>
    %36 = arith.muli %34, %35 : vector<8x128xi32>
    %c14_i32_6 = arith.constant 14 : i32
    %37 = vector.broadcast %c14_i32_6 : i32 to vector<8x128xi32>
    %38 = arith.shrui %36, %37 : vector<8x128xi32>
    %39 = arith.xori %36, %38 : vector<8x128xi32>
    %40 = vector.broadcast %19 : i32 to vector<8x128xi32>
    %41 = arith.xori %7, %40 : vector<8x128xi32>
    %c-1640531527_i32 = arith.constant -1640531527 : i32
    %42 = vector.broadcast %c-1640531527_i32 : i32 to vector<8x128xi32>
    %43 = arith.xori %41, %42 : vector<8x128xi32>
    %c17_i32_7 = arith.constant 17 : i32
    %44 = vector.broadcast %c17_i32_7 : i32 to vector<8x128xi32>
    %45 = arith.shrui %43, %44 : vector<8x128xi32>
    %46 = arith.xori %43, %45 : vector<8x128xi32>
    %c-312814405_i32_8 = arith.constant -312814405 : i32
    %47 = vector.broadcast %c-312814405_i32_8 : i32 to vector<8x128xi32>
    %48 = arith.muli %46, %47 : vector<8x128xi32>
    %c11_i32_9 = arith.constant 11 : i32
    %49 = vector.broadcast %c11_i32_9 : i32 to vector<8x128xi32>
    %50 = arith.shrui %48, %49 : vector<8x128xi32>
    %51 = arith.xori %48, %50 : vector<8x128xi32>
    %c-1404298415_i32_10 = arith.constant -1404298415 : i32
    %52 = vector.broadcast %c-1404298415_i32_10 : i32 to vector<8x128xi32>
    %53 = arith.muli %51, %52 : vector<8x128xi32>
    %c15_i32_11 = arith.constant 15 : i32
    %54 = vector.broadcast %c15_i32_11 : i32 to vector<8x128xi32>
    %55 = arith.shrui %53, %54 : vector<8x128xi32>
    %56 = arith.xori %53, %55 : vector<8x128xi32>
    %c830770091_i32_12 = arith.constant 830770091 : i32
    %57 = vector.broadcast %c830770091_i32_12 : i32 to vector<8x128xi32>
    %58 = arith.muli %56, %57 : vector<8x128xi32>
    %c14_i32_13 = arith.constant 14 : i32
    %59 = vector.broadcast %c14_i32_13 : i32 to vector<8x128xi32>
    %60 = arith.shrui %58, %59 : vector<8x128xi32>
    %61 = arith.xori %58, %60 : vector<8x128xi32>
    %c8_i32 = arith.constant 8 : i32
    %62 = vector.broadcast %c8_i32 : i32 to vector<8x128xi32>
    %63 = arith.shrui %39, %62 : vector<8x128xi32>
    %64 = arith.uitofp %63 : vector<8x128xi32> to vector<8x128xf32>
    %cst = arith.constant 1.000000e+00 : f32
    %65 = vector.broadcast %cst : f32 to vector<8x128xf32>
    %66 = arith.addf %64, %65 : vector<8x128xf32>
    %cst_14 = arith.constant 5.96046448E-8 : f32
    %67 = vector.broadcast %cst_14 : f32 to vector<8x128xf32>
    %68 = arith.mulf %66, %67 : vector<8x128xf32>
    %c8_i32_15 = arith.constant 8 : i32
    %69 = vector.broadcast %c8_i32_15 : i32 to vector<8x128xi32>
    %70 = arith.shrui %61, %69 : vector<8x128xi32>
    %71 = arith.uitofp %70 : vector<8x128xi32> to vector<8x128xf32>
    %cst_16 = arith.constant 0.000000e+00 : f32
    %72 = vector.broadcast %cst_16 : f32 to vector<8x128xf32>
    %73 = arith.addf %71, %72 : vector<8x128xf32>
    %cst_17 = arith.constant 5.96046448E-8 : f32
    %74 = vector.broadcast %cst_17 : f32 to vector<8x128xf32>
    %75 = arith.mulf %73, %74 : vector<8x128xf32>
    %76 = math.log %68 : vector<8x128xf32>
    %cst_18 = arith.constant -2.000000e+00 : f32
    %77 = vector.broadcast %cst_18 : f32 to vector<8x128xf32>
    %78 = arith.mulf %77, %76 : vector<8x128xf32>
    %79 = math.sqrt %78 : vector<8x128xf32>
    %cst_19 = arith.constant 6.28318548 : f32
    %80 = vector.broadcast %cst_19 : f32 to vector<8x128xf32>
    %81 = arith.mulf %80, %75 : vector<8x128xf32>
    %82 = math.cos %81 : vector<8x128xf32>
    %83 = arith.mulf %79, %82 : vector<8x128xf32>
    %84 = math.sin %81 : vector<8x128xf32>
    %85 = arith.mulf %79, %84 : vector<8x128xf32>
    %c0_20 = arith.constant 0 : index
    %86 = memref.load %arg2[%c0_20] : memref<1xf32, #tpu.memory_space<smem>>
    %c0_21 = arith.constant 0 : index
    %c0_22 = arith.constant 0 : index
    %87 = vector.load %arg3[%c0_21, %c0_22] : memref<16x128xf32, #tpu.memory_space<vmem>>, vector<8x128xf32>
    %88 = vector.broadcast %86 : f32 to vector<8x128xf32>
    %89 = arith.mulf %83, %88 : vector<8x128xf32>
    %cst_23 = arith.constant 1.000000e+00 : f32
    %90 = vector.broadcast %cst_23 : f32 to vector<8x128xf32>
    %91 = arith.addf %90, %89 : vector<8x128xf32>
    %92 = arith.mulf %87, %91 : vector<8x128xf32>
    %c0_24 = arith.constant 0 : index
    %c0_25 = arith.constant 0 : index
    %93 = vector.load %arg4[%c0_24, %c0_25] : memref<16x128xf32, #tpu.memory_space<vmem>>, vector<8x128xf32>
    tpu.vector_store %arg4[%c0_24, %c0_25], %92 {strides = array<i32>} : memref<16x128xf32, #tpu.memory_space<vmem>>, vector<8x128xf32>,
    %c8 = arith.constant 8 : index
    %c0_26 = arith.constant 0 : index
    %94 = vector.load %arg3[%c8, %c0_26] : memref<16x128xf32, #tpu.memory_space<vmem>>, vector<8x128xf32>
    %95 = vector.broadcast %86 : f32 to vector<8x128xf32>
    %96 = arith.mulf %85, %95 : vector<8x128xf32>
    %cst_27 = arith.constant 1.000000e+00 : f32
    %97 = vector.broadcast %cst_27 : f32 to vector<8x128xf32>
    %98 = arith.addf %97, %96 : vector<8x128xf32>
    %99 = arith.mulf %94, %98 : vector<8x128xf32>
    %c8_28 = arith.constant 8 : index
    %c0_29 = arith.constant 0 : index
    %100 = vector.load %arg4[%c8_28, %c0_29] : memref<16x128xf32, #tpu.memory_space<vmem>>, vector<8x128xf32>
    tpu.vector_store %arg4[%c8_28, %c0_29], %99 {strides = array<i32>} : memref<16x128xf32, #tpu.memory_space<vmem>>, vector<8x128xf32>,
    return
  }
  func.func @transform_0(%arg0: i32) -> i32 {
    %c0_i32 = arith.constant 0 : i32
    %c0_i32_0 = arith.constant 0 : i32
    return %c0_i32 : i32
  }
  func.func @transform_1(%arg0: i32) -> i32 {
    %c0_i32 = arith.constant 0 : i32
    %c0_i32_0 = arith.constant 0 : i32
    return %c0_i32 : i32
  }
  func.func @transform_2(%arg0: i32) -> (i32, i32) {
    %c0_i32 = arith.constant 0 : i32
    %c0_i32_0 = arith.constant 0 : i32
    return %arg0, %c0_i32 : i32, i32
  }
  func.func @transform_3(%arg0: i32) -> (i32, i32) {
    %c0_i32 = arith.constant 0 : i32
    %c0_i32_0 = arith.constant 0 : i32
    return %arg0, %c0_i32 : i32, i32
  }
}

</mosaic_0001>

<llo_original>
// kernel: tpu_custom_call.1
$region0: #{tpu_custom_call.1}
  #allocation0 [shape = 'u32[]', space=smem, size = 0x4, offset = 0x4, fixed_abs, tag = 'smem constant byte address 0x4 - core index']
  #allocation1 [shape = 'u32[144,128]{1,0:T(1,128)}', space=vmem, size = 0x12000, scoped, tag = 'internal scratch']
  #allocation2 [shape = 's32[1]{0:T(128)S(6)}', space=smem, size = 0x200, scoped, tag = 'scoped memory for tpu_custom_call.1']
  #allocation3 [shape = 'f32[1]{0:T(128)S(6)}', space=smem, size = 0x200, scoped, tag = 'scoped memory for tpu_custom_call.1']
  %s0 = inlined_call_operand.<no memory space> [shape: s32[1], index: 0, kind: input, shape index: {}]
  %s1 = inlined_call_operand.<no memory space> [shape: f32[1], index: 1, kind: input, shape index: {}]
  %s2 = inlined_call_operand.hbm [shape: f32[16,128], index: 2, kind: input, shape index: {}]
  %s3 = inlined_call_operand.hbm [shape: f32[16,128], index: 3, kind: output, shape index: {}]
  %s4 = sld [smem:[#allocation0]]
  $region26: #{tpu_custom_call.1} parent=0
    _
  %s6 = ssub.s32 1, %s4
  %s7 = scalar_select 0, %s6, %s4
  %8 = sst [smem:[#allocation2]] %s0
  %9 = sst [smem:[#allocation3]] %s1
  $region1: #{tpu_custom_call.1} parent=0
    #allocation4 [shape = 'u8[8192]{0}', space=vmem, size = 0x2000, scoped, tag = 'input window, operand 2, single buffered']
    #allocation5 [shape = 's32[1]{0}', space=sflag, size = 0x4, scoped, tag = 'scoped memory for tpu_custom_call.1']
    #allocation6 [shape = 's32[1]{0}', space=sflag, size = 0x4, scoped, tag = 'scoped memory for tpu_custom_call.1']
    #allocation7 [shape = 'u8[8192]{0}', space=vmem, size = 0x2000, scoped, tag = 'output window, operand 0, single buffered']
    %10 = vsyncpa [#allocation5], 0
    %11 = vsyncpa [#allocation6], 0
    // Predicated region
    $region2: #{tpu_custom_call.1} parent=1 // pred_check
      _
    $region3: #{tpu_custom_call.1} parent=1 // pred_check_branch
      %13 = sbr.rel (0) target = $region5
    $region4: #{tpu_custom_call.1} parent=1 // pred_region
      _
    $region5: #{tpu_custom_call.1} parent=1 // pred_fallthru
      _
    // Predicated region
    $region6: #{tpu_custom_call.1} parent=1 // pred_check
      _
    $region7: #{tpu_custom_call.1} parent=1 // pred_check_branch
      %15 = sbr.rel (0) target = $region9
    $region8: #{tpu_custom_call.1} parent=1 // pred_region
      _
    $region9: #{tpu_custom_call.1} parent=1 // pred_fallthru
      _
    // Predicated region
    $region10: #{tpu_custom_call.1} parent=1 // pred_check
      _
    $region11: #{tpu_custom_call.1} parent=1 // pred_check_branch
      %17 = sbr.rel (0) target = $region13
    $region12: #{tpu_custom_call.1} parent=1 // pred_region
      %s19 = ssub.s32 256, 256
      %20 = vsyncadd [#allocation5], %s19
      %s21 = sshll.u32 [#allocation4], 4
      %s22 = int_to_ptr.vmem [resolvable:$true] %s21
      %27 = dma.hbm_to_vmem [thread:$0]  %s2, 256, %s22, [#allocation5], 128, 128, 8
    $region13: #{tpu_custom_call.1} parent=1 // pred_fallthru
      _
    // Predicated region
    $region14: #{tpu_custom_call.1} parent=1 // pred_check
      _
    $region15: #{tpu_custom_call.1} parent=1 // pred_check_branch
      %29 = sbr.rel (0) target = $region17
    $region16: #{tpu_custom_call.1} parent=1 // pred_region
      %30 = dma.done [#allocation5], 256
    $region17: #{tpu_custom_call.1} parent=1 // pred_fallthru
      _
    %v31 = vlaneseq
    %v32 = vshrl.u32 %v31, 7
    %v33 = vlaneseq
    %v34 = vand.u32 %v33, 127
    %s35 = smul.u32 0, 1024
    %v36 = vmul.u32 %v32, 128
    %v37 = vstv %s35
    %v38 = vadd.s32 %v37, %v36
    %v39 = vadd.s32 %v38, %v34
    %s40 = sld [smem:[#allocation2]]
    %s41 = sshrl.u32 %s40, 17
    %s42 = sxor.u32 %s40, %s41
    %s43 = smul.u32 %s42, 3982152891
    %s44 = sshrl.u32 %s43, 11
    %s45 = sxor.u32 %s43, %s44
    %s46 = smul.u32 %s45, 2890668881
    %s47 = sshrl.u32 %s46, 15
    %s48 = sxor.u32 %s46, %s47
    %s49 = smul.u32 %s48, 830770091
    %s50 = sshrl.u32 %s49, 14
    %s51 = sxor.u32 %s49, %s50
    %v52 = vstv %s51
    %v53 = vxor.u32 %v39, %v52
    %v54 = vshrl.u32 %v53, 17
    %v55 = vxor.u32 %v53, %v54
    %v56 = vmul.u32 %v55, 3982152891
    %v57 = vshrl.u32 %v56, 11
    %v58 = vxor.u32 %v56, %v57
    %v59 = vmul.u32 %v58, 2890668881
    %v60 = vshrl.u32 %v59, 15
    %v61 = vxor.u32 %v59, %v60
    %v62 = vmul.u32 %v61, 830770091
    %v63 = vshrl.u32 %v62, 14
    %v64 = vxor.u32 %v62, %v63
    %v65 = vxor.u32 %v53, 2654435769
    %v66 = vshrl.u32 %v65, 17
    %v67 = vxor.u32 %v65, %v66
    %v68 = vmul.u32 %v67, 3982152891
    %v69 = vshrl.u32 %v68, 11
    %v70 = vxor.u32 %v68, %v69
    %v71 = vmul.u32 %v70, 2890668881
    %v72 = vshrl.u32 %v71, 15
    %v73 = vxor.u32 %v71, %v72
    %v74 = vmul.u32 %v73, 830770091
    %v75 = vshrl.u32 %v74, 14
    %v76 = vxor.u32 %v74, %v75
    %v77 = vshrl.u32 %v64, 8
    %v78 = vshrl.u32 %v77, 16
    %v79 = vand.u32 %v77, 65535
    %v80 = vcvt.s32.f32 %v78
    %v81 = vmul.f32 %v80, 65536.0
    %v82 = vcvt.s32.f32 %v79
    %v83 = vadd.f32 %v81, %v82
    %v84 = vadd.f32 %v83, 1.0
    %v85 = vmul.f32 %v84, 5.9604645e-08
    %v86 = vshrl.u32 %v76, 8
    %v87 = vshrl.u32 %v86, 16
    %v88 = vand.u32 %v86, 65535
    %v89 = vcvt.s32.f32 %v87
    %v90 = vmul.f32 %v89, 65536.0
    %v91 = vcvt.s32.f32 %v88
    %v92 = vadd.f32 %v90, %v91
    %v93 = vadd.f32 %v92, 0.0
    %v94 = vmul.f32 %v93, 5.9604645e-08
    %v95 = vlog2.pop %v85
    %v96 = vmul.f32 %v95, 0.6931472
    %v97 = vmul.f32 %v96, -2.0
    %v98 = vrsqrt.pop %v97
    %v99 = vmul.f32 %v97, %v98
    %vm100 = vcmp.eq.f32.partialorder %v97, inf
    %v101 = vsel %vm100, %v97, %v99
    %vm102 = vcmp.eq.f32.partialorder %v97, 0.0
    %v103 = vand.u32 %v97, 2147483648
    %v104 = vsel %vm102, %v103, %v101
    %v105 = vmul.f32 %v94, 6.2831855
    %v106 = vand.u32 2147483647, %v105
    %vm107 = vcmp.le.f32.partialorder %v106, 0.7853982
    %vm108 = vcmp.lt.s32.totalorder %v105, 0
    %v109 = vand.u32 %v105, 2139095040
    %v110 = vshrl.u32 %v109, 23
    %v111 = vsub.s32 %v110, 127
    %v112 = vand.u32 2147483647, %v105
    %v113 = vand.u32 %v112, 8388607
    %v114 = vor.u32 %v113, 8388608
    %v115 = vsub.s32 0, %v114
    %v116 = vadd.s32 %v111, 1
    %vm117 = vcmp.gt.s32.totalorder %v116, 0
    %v118 = vsel %vm117, %v116, 0
    %v119 = vshrl.u32 %v118, 5
    %v120 = vand.u32 %v118, 31
    %v121 = vsub.s32 32, %v120
    %v122 = vshrl.u32 683565275, %v121
    %v123 = vshll.u32 683565275, %v120
    %v124 = vshrl.u32 2475754826, %v121
    %v125 = vor.u32 %v123, %v124
    %v126 = vshll.u32 2475754826, %v120
    %v127 = vshrl.u32 2131351028, %v121
    %v128 = vor.u32 %v126, %v127
    %v129 = vshll.u32 2131351028, %v120
    %v130 = vshrl.u32 2102212464, %v121
    %v131 = vor.u32 %v129, %v130
    %v132 = vshll.u32 2102212464, %v120
    %v133 = vshrl.u32 920167782, %v121
    %v134 = vor.u32 %v132, %v133
    %v135 = vshll.u32 920167782, %v120
    %v136 = vshrl.u32 1326507024, %v121
    %v137 = vor.u32 %v135, %v136
    %vm138 = vcmp.lt.s32.totalorder %v119, 1
    %vm139 = vcmp.lt.s32.totalorder %v119, 2
    %vm140 = vcmp.lt.s32.totalorder %v119, 3
    %vm141 = vcmp.lt.s32.totalorder %v119, 4
    %v142 = vsel %vm138, %v122, %v125
    %v143 = vsel %vm141, %v131, 2102212464
    %v144 = vsel %vm140, %v128, %v143
    %v145 = vsel %vm139, %v142, %v144
    %v146 = vsel %vm138, %v125, %v128
    %v147 = vsel %vm141, %v134, 920167782
    %v148 = vsel %vm140, %v131, %v147
    %v149 = vsel %vm139, %v146, %v148
    %v150 = vsel %vm138, %v128, %v131
    %v151 = vsel %vm141, %v137, 1326507024
    %v152 = vsel %vm140, %v134, %v151
    %v153 = vsel %vm139, %v150, %v152
    %v154 = vshll.u32 %v114, 8
    %v155 = vmul.u32.u64.compose %v154, %v153
    %v156 = vextract.low.u32 %v155
    %v157 = vextract.high.u32 %v155
    %v158 = vmul.u32.u64.compose %v154, %v149
    %v159 = vextract.low.u32 %v158
    %v160 = vextract.high.u32 %v158
    %v161 = vmul.u32 %v154, %v145
    %v162 = vadd.s32 %v157, %v159
    %vm163 = vc.u32 %v157, %v159
    %v164 = vadd.s32 %v160, 1
    %v165 = vsel %vm163, %v164, %v160
    %v166 = vadd.s32 %v161, %v165
    %v167 = vadd.s32 %v166, 536870912
    %v168 = vshrl.u32 %v167, 30
    %v169 = vshll.u32 %v168, 30
    %v170 = vsub.s32 %v166, %v169
    %vm171 = vcmp.lt.s32.totalorder %v170, 0
    %v172 = vsub.s32 0, %v170
    %v173 = vsel %vm171, %v172, %v170
    %v174 = vclz %v173
    %v175 = vsub.s32 %v174, 2
    %vm176 = vcmp.gt.s32.totalorder 0, %v175
    %v177 = vsel %vm176, 0, %v175
    %v178 = vsub.s32 32, %v177
    %v179 = vshll.u32 %v170, %v177
    %v180 = vshrl.u32 %v162, %v178
    %v181 = vor.u32 %v179, %v180
    %v182 = vsub.s32 4294967266, %v177
    %v183 = vadd.s32 %v182, 127
    %v184 = vshll.u32 %v183, 23
    %v185 = vor.u32 4788187, %v184
    %v186 = vand.u32 2147483647, %v185
    %v188 = vcvt.s32.f32 %v181
    %v189 = vmul.f32 %v188, %v186
    %v190 = vxor.u32 %v189, 2147483648
    %v191 = vsel %vm108, %v190, %v189
    %v192 = vsub.s32 4, %v168
    %v193 = vsel %vm108, %v192, %v168
    %v194 = vsel %vm107, %v105, %v191
    %v195 = vsel %vm107, 0, %v193
    %v196 = vcosq.f32.pop %v194
    %v197 = vsinq.f32.pop %v194
    %vm198 = vweird.f32 %v105
    %v199 = vand.u32 %v195, 3
    %vm200 = vcmp.lt.s32.totalorder %v199, 2
    %vm201 = vcmp.eq.s32.totalorder %v199, 0
    %v202 = vxor.u32 %v197, 2147483648
    %v203 = vsel %vm201, %v196, %v202
    %vm204 = vcmp.eq.s32.totalorder %v199, 2
    %v205 = vxor.u32 %v196, 2147483648
    %v206 = vsel %vm204, %v205, %v197
    %v207 = vsel %vm200, %v203, %v206
    %v208 = vsel %vm198, nan, %v207
    %v209 = vmul.f32 %v104, %v208
    %v210 = vand.u32 2147483647, %v105
    %vm211 = vcmp.le.f32.partialorder %v210, 0.7853982
    %vm212 = vcmp.lt.s32.totalorder %v105, 0
    %v213 = vand.u32 %v105, 2139095040
    %v214 = vshrl.u32 %v213, 23
    %v215 = vsub.s32 %v214, 127
    %v216 = vand.u32 2147483647, %v105
    %v217 = vand.u32 %v216, 8388607
    %v218 = vor.u32 %v217, 8388608
    %v219 = vsub.s32 0, %v218
    %v220 = vadd.s32 %v215, 1
    %vm221 = vcmp.gt.s32.totalorder %v220, 0
    %v222 = vsel %vm221, %v220, 0
    %v223 = vshrl.u32 %v222, 5
    %v224 = vand.u32 %v222, 31
    %v225 = vsub.s32 32, %v224
    %v226 = vshrl.u32 683565275, %v225
    %v227 = vshll.u32 683565275, %v224
    %v228 = vshrl.u32 2475754826, %v225
    %v229 = vor.u32 %v227, %v228
    %v230 = vshll.u32 2475754826, %v224
    %v231 = vshrl.u32 2131351028, %v225
    %v232 = vor.u32 %v230, %v231
    %v233 = vshll.u32 2131351028, %v224
    %v234 = vshrl.u32 2102212464, %v225
    %v235 = vor.u32 %v233, %v234
    %v236 = vshll.u32 2102212464, %v224
    %v237 = vshrl.u32 920167782, %v225
    %v238 = vor.u32 %v236, %v237
    %v239 = vshll.u32 920167782, %v224
    %v240 = vshrl.u32 1326507024, %v225
    %v241 = vor.u32 %v239, %v240
    %vm242 = vcmp.lt.s32.totalorder %v223, 1
    %vm243 = vcmp.lt.s32.totalorder %v223, 2
    %vm244 = vcmp.lt.s32.totalorder %v223, 3
    %vm245 = vcmp.lt.s32.totalorder %v223, 4
    %v246 = vsel %vm242, %v226, %v229
    %v247 = vsel %vm245, %v235, 2102212464
    %v248 = vsel %vm244, %v232, %v247
    %v249 = vsel %vm243, %v246, %v248
    %v250 = vsel %vm242, %v229, %v232
    %v251 = vsel %vm245, %v238, 920167782
    %v252 = vsel %vm244, %v235, %v251
    %v253 = vsel %vm243, %v250, %v252
    %v254 = vsel %vm242, %v232, %v235
    %v255 = vsel %vm245, %v241, 1326507024
    %v256 = vsel %vm244, %v238, %v255
    %v257 = vsel %vm243, %v254, %v256
    %v258 = vshll.u32 %v218, 8
    %v259 = vmul.u32.u64.compose %v258, %v257
    %v260 = vextract.low.u32 %v259
    %v261 = vextract.high.u32 %v259
    %v262 = vmul.u32.u64.compose %v258, %v253
    %v263 = vextract.low.u32 %v262
    %v264 = vextract.high.u32 %v262
    %v265 = vmul.u32 %v258, %v249
    %v266 = vadd.s32 %v261, %v263
    %vm267 = vc.u32 %v261, %v263
    %v268 = vadd.s32 %v264, 1
    %v269 = vsel %vm267, %v268, %v264
    %v270 = vadd.s32 %v265, %v269
    %v271 = vadd.s32 %v270, 536870912
    %v272 = vshrl.u32 %v271, 30
    %v273 = vshll.u32 %v272, 30
    %v274 = vsub.s32 %v270, %v273
    %vm275 = vcmp.lt.s32.totalorder %v274, 0
    %v276 = vsub.s32 0, %v274
    %v277 = vsel %vm275, %v276, %v274
    %v278 = vclz %v277
    %v279 = vsub.s32 %v278, 2
    %vm280 = vcmp.gt.s32.totalorder 0, %v279
    %v281 = vsel %vm280, 0, %v279
    %v282 = vsub.s32 32, %v281
    %v283 = vshll.u32 %v274, %v281
    %v284 = vshrl.u32 %v266, %v282
    %v285 = vor.u32 %v283, %v284
    %v286 = vsub.s32 4294967266, %v281
    %v287 = vadd.s32 %v286, 127
    %v288 = vshll.u32 %v287, 23
    %v289 = vor.u32 4788187, %v288
    %v290 = vand.u32 2147483647, %v289
    %v292 = vcvt.s32.f32 %v285
    %v293 = vmul.f32 %v292, %v290
    %v294 = vxor.u32 %v293, 2147483648
    %v295 = vsel %vm212, %v294, %v293
    %v296 = vsub.s32 4, %v272
    %v297 = vsel %vm212, %v296, %v272
    %v298 = vsel %vm211, %v105, %v295
    %v299 = vsel %vm211, 0, %v297
    %v300 = vcosq.f32.pop %v298
    %v301 = vsinq.f32.pop %v298
    %vm302 = vweird.f32 %v105
    %v303 = vadd.s32 %v299, 3
    %v304 = vand.u32 %v303, 3
    %vm305 = vcmp.lt.s32.totalorder %v304, 2
    %vm306 = vcmp.eq.s32.totalorder %v304, 0
    %v307 = vxor.u32 %v301, 2147483648
    %v308 = vsel %vm306, %v300, %v307
    %vm309 = vcmp.eq.s32.totalorder %v304, 2
    %v310 = vxor.u32 %v300, 2147483648
    %v311 = vsel %vm309, %v310, %v301
    %v312 = vsel %vm305, %v308, %v311
    %v313 = vsel %vm302, nan, %v312
    %v314 = vmul.f32 %v104, %v313
    %s315 = sld [smem:[#allocation3]]
    %v316 = vld [vmem:[#allocation4] sm:$0xff]
    %v317 = vstv %s315
    %v318 = vmul.f32 %v209, %v317
    %v319 = vadd.f32 %v318, 1.0
    %v320 = vmul.f32 %v316, %v319
    %321 = vst [vmem:[#allocation7] sm:$0xff] %v320
    %v322 = vld [vmem:[#allocation4 + $0x8] sm:$0xff]
    %v323 = vmul.f32 %v314, %v317
    %v324 = vadd.f32 %v323, 1.0
    %v325 = vmul.f32 %v322, %v324
    %326 = vst [vmem:[#allocation7 + $0x8] sm:$0xff] %v325
    // Predicated region
    $region18: #{tpu_custom_call.1} parent=1 // pred_check
      _
    $region19: #{tpu_custom_call.1} parent=1 // pred_check_branch
      %328 = sbr.rel (0) target = $region21
    $region20: #{tpu_custom_call.1} parent=1 // pred_region
      %s330 = ssub.s32 256, 256
      %331 = vsyncadd [#allocation6], %s330
      %s332 = sshll.u32 [#allocation7], 4
      %s333 = int_to_ptr.vmem [resolvable:$true] %s332
      %338 = dma.vmem_to_hbm [thread:$0]  %s333, 256, %s3, [#allocation6], 128, 128, 8
    $region21: #{tpu_custom_call.1} parent=1 // pred_fallthru
      _
    // Predicated region
    $region22: #{tpu_custom_call.1} parent=1 // pred_check
      _
    $region23: #{tpu_custom_call.1} parent=1 // pred_check_branch
      %340 = sbr.rel (0) target = $region25
    $region24: #{tpu_custom_call.1} parent=1 // pred_region
      %341 = dma.done [#allocation6], 256
    $region25: #{tpu_custom_call.1} parent=1 // pred_fallthru
      _
    %342 = vsyncpa [#allocation5], 1
    %343 = vsyncpa [#allocation6], 1

</llo_original>
